<compile_context>
chip_gen: v7x
topology: tpu7x:2x2x1
jax: 0.10.0
libtpu: 0.0.40
codegen_flags: <defaults>
</compile_context>

<pallas_src>
import jax
import jax.numpy as jnp
from jax.experimental import pallas as pl
from jax.experimental.pallas import tpu as pltpu

LANE = 128     # lane width of a vreg
SUB = 8        # sublane count of a vreg


def _round_up(n, m):
    return -(-n // m) * m


def actor_kernel(w_ref, x_ref, o_ref):
    """w_ref: SMEM (2,) f32; x_ref: VMEM (row_tile, 128) f32;
    o_ref: VMEM (row_tile, 128) f32 holding p0 only (p1 = 1 - p0)."""
    x = x_ref[...]                                   # full-width vld
    w0 = w_ref[0]                                    # SMEM scalar reads
    w1 = w_ref[1]

    # softmax over 2 logits (x*w0, x*w1) == sigmoid of the logit difference:
    #   p0 = sigmoid(x*(w0 - w1)),  p1 = 1 - p0     (exact identity)
    z = x * (w0 - w1)                                # VPU broadcast multiply
    t = jnp.exp(-jnp.abs(z))                         # EUP exp, in (0, 1]
    s = t / (1.0 + t)                                # exact div (free: HBM-bound)
    p0 = jnp.where(z >= 0, 1.0 - s, s)               # stable sigmoid(z)

    o_ref[...] = p0                                  # full-width unmasked vst


def actor_forward(x, w, *, max_row_tile=2048, small_batch_threshold=4096,
                  force_kernel=False):
    """x: (B, 1) f32, w: (2, 1) f32 (nn.Linear(1, 2, bias=False).weight).
    Returns softmax(x @ w.T, axis=-1) of shape (B, 2)."""
    B = x.shape[0]
    OUT = w.shape[0]
    assert OUT == 2, "Actor has exactly 2 output classes"

    x_flat = jnp.reshape(x.astype(jnp.float32), (B,))
    w_vec = jnp.reshape(w.astype(jnp.float32), (OUT,))

    # ---- small-batch fast path: fused XLA elementwise, no padding/dispatch --
    if not force_kernel and B < small_batch_threshold:
        p0 = jax.nn.sigmoid(x_flat * (w_vec[0] - w_vec[1]))
        return jnp.stack([p0, 1.0 - p0], axis=-1)

    # ---- lane-dense batch slab: B -> (rows_pad, 128) f32 -------------------
    n_rows = _round_up(-(-B // LANE), SUB)            # ceil(B/128), x8 aligned
    # Cap the tile so large batches produce >= 2 grid blocks (v7x: both TCs
    # share 3.2 TB/s HBM; a 1-block grid leaves one TC idle).
    half_rows = max(SUB, _round_up(max(n_rows // 2, 1), SUB))
    row_tile = min(max_row_tile, half_rows)
    rows_pad = _round_up(n_rows, row_tile)
    BP = rows_pad * LANE

    if BP > B:
        x_slab = jnp.pad(x_flat, (0, BP - B))         # single fused pad
    else:
        x_slab = x_flat
    x_slab = x_slab.reshape(rows_pad, LANE)

    grid = (rows_pad // row_tile,)

    p0_slab = pl.pallas_call(
        actor_kernel,
        out_shape=jax.ShapeDtypeStruct((rows_pad, LANE), jnp.float32),
        grid=grid,
        in_specs=[
            # 2-scalar weight lives entirely in SMEM (no vector DMA).
            pl.BlockSpec(memory_space=pltpu.MemorySpace.SMEM),
            # Lane-dense batch tile.
            pl.BlockSpec((row_tile, LANE), lambda i: (i, 0)),
        ],
        out_specs=pl.BlockSpec((row_tile, LANE), lambda i: (i, 0)),
        compiler_params=pltpu.CompilerParams(
            dimension_semantics=("parallel",),        # shard batch across TCs
        ),
    )(w_vec, x_slab)

    # Back to the PyTorch layout (B, 2) with one fused stack (no transpose).
    p0 = p0_slab.reshape(BP)[:B]
    return jnp.stack([p0, 1.0 - p0], axis=-1)


def reference_forward(x, w):
    logits = x @ w.T
    return jax.nn.softmax(logits, axis=-1)


if __name__ == "__main__":
    key = jax.random.PRNGKey(0)
    k_x, k_w = jax.random.split(key)

    B = 8                                              # small batch
    # nn.Linear(1, 2, bias=False) weight shape: (2, 1); deterministic init.
    w = jax.random.uniform(k_w, (2, 1), dtype=jnp.float32, minval=-1.0, maxval=1.0)
    x = jax.random.normal(k_x, (B, 1), dtype=jnp.float32)

    ref = reference_forward(x, w)

    # Pallas kernel path (forced, so the kernel is exercised even at B=8).
    out = actor_forward(x, w, force_kernel=True)
    out = jax.block_until_ready(out)
    assert out.shape == (B, 2)
    assert jnp.allclose(out, ref, atol=1e-5, rtol=1e-5), (out, ref)
    assert jnp.allclose(jnp.sum(out, axis=-1), 1.0, atol=1e-6)

    # Small-batch fast path sanity check (plain XLA, no kernel dispatch).
    out_fast = jax.block_until_ready(actor_forward(x, w))
    assert jnp.allclose(out_fast, ref, atol=1e-5, rtol=1e-5), (out_fast, ref)

    print("KERNEL_OK")
</pallas_src>

<mosaic_0001>
module attributes {stable_mosaic.version = 11 : i64} {
  func.func @actor_kernel(%arg0: i32, %arg1: memref<2xf32, #tpu.memory_space<smem>>, %arg2: memref<8x128xf32, #tpu.memory_space<vmem>>, %arg3: memref<8x128xf32, #tpu.memory_space<vmem>>) attributes {dimension_semantics = [#tpu.dimension_semantics<parallel>], iteration_bounds = array<i64: 1>, scalar_prefetch = 0 : i64, scratch_operands = 0 : i64, tpu.core_type = #tpu.core_type<tc>, window_params = [{transform_indices = @transform_0, window_bounds = array<i64: 2>}, {transform_indices = @transform_1, window_bounds = array<i64: 8, 128>}, {transform_indices = @transform_2, window_bounds = array<i64: 8, 128>}]} {
    %c0 = arith.constant 0 : index
    %c0_0 = arith.constant 0 : index
    %0 = vector.load %arg2[%c0, %c0_0] : memref<8x128xf32, #tpu.memory_space<vmem>>, vector<8x128xf32>
    %c0_1 = arith.constant 0 : index
    %1 = memref.load %arg1[%c0_1] : memref<2xf32, #tpu.memory_space<smem>>
    %c1 = arith.constant 1 : index
    %2 = memref.load %arg1[%c1] : memref<2xf32, #tpu.memory_space<smem>>
    %3 = arith.subf %1, %2 : f32
    %4 = vector.broadcast %3 : f32 to vector<8x128xf32>
    %5 = arith.mulf %0, %4 : vector<8x128xf32>
    %6 = math.absf %5 : vector<8x128xf32>
    %cst = arith.constant 0.000000e+00 : f32
    %7 = vector.broadcast %cst : f32 to vector<8x128xf32>
    %8 = arith.subf %7, %6 : vector<8x128xf32>
    %9 = math.exp %8 : vector<8x128xf32>
    %cst_2 = arith.constant 1.000000e+00 : f32
    %10 = vector.broadcast %cst_2 : f32 to vector<8x128xf32>
    %11 = arith.addf %10, %9 : vector<8x128xf32>
    %12 = arith.divf %9, %11 : vector<8x128xf32>
    %cst_3 = arith.constant 0.000000e+00 : f32
    %13 = vector.broadcast %cst_3 : f32 to vector<8x128xf32>
    %14 = arith.cmpf oge, %5, %13 : vector<8x128xf32>
    %cst_4 = arith.constant 1.000000e+00 : f32
    %15 = vector.broadcast %cst_4 : f32 to vector<8x128xf32>
    %16 = arith.subf %15, %12 : vector<8x128xf32>
    %17 = arith.select %14, %16, %12 : vector<8x128xi1>, vector<8x128xf32>
    %c0_5 = arith.constant 0 : index
    %c0_6 = arith.constant 0 : index
    %18 = vector.load %arg3[%c0_5, %c0_6] : memref<8x128xf32, #tpu.memory_space<vmem>>, vector<8x128xf32>
    tpu.vector_store %arg3[%c0_5, %c0_6], %17 {strides = array<i32>} : memref<8x128xf32, #tpu.memory_space<vmem>>, vector<8x128xf32>,
    return
  }
  func.func @transform_0(%arg0: i32) -> i32 {
    %c0_i32 = arith.constant 0 : i32
    %c0_i32_0 = arith.constant 0 : i32
    return %c0_i32 : i32
  }
  func.func @transform_1(%arg0: i32) -> (i32, i32) {
    %c0_i32 = arith.constant 0 : i32
    %c0_i32_0 = arith.constant 0 : i32
    return %arg0, %c0_i32 : i32, i32
  }
  func.func @transform_2(%arg0: i32) -> (i32, i32) {
    %c0_i32 = arith.constant 0 : i32
    %c0_i32_0 = arith.constant 0 : i32
    return %arg0, %c0_i32 : i32, i32
  }
}

</mosaic_0001>

<llo_original>
// kernel: tpu_custom_call.1
$region0: #{tpu_custom_call.1}
  #allocation0 [shape = 'u32[]', space=smem, size = 0x4, offset = 0x4, fixed_abs, tag = 'smem constant byte address 0x4 - core index']
  #allocation1 [shape = 'u32[144,128]{1,0:T(1,128)}', space=vmem, size = 0x12000, scoped, tag = 'internal scratch']
  %s0 = inlined_call_operand.hbm [shape: f32[2], index: 0, kind: input, shape index: {}]
  %s1 = inlined_call_operand.hbm [shape: f32[8,128], index: 1, kind: input, shape index: {}]
  %s2 = inlined_call_operand.hbm [shape: f32[8,128], index: 2, kind: output, shape index: {}]
  %s3 = sld [smem:[#allocation0]]
  $region26: #{tpu_custom_call.1} parent=0
    _
  %s5 = ssub.s32 1, %s3
  %s6 = scalar_select 0, %s5, %s3
  $region1: #{tpu_custom_call.1} parent=0
    #allocation2 [shape = 'u8[512]{0}', space=smem, size = 0x200, scoped, tag = 'input window, operand 0, single buffered']
    #allocation3 [shape = 's32[1]{0}', space=sflag, size = 0x4, scoped, tag = 'scoped memory for tpu_custom_call.1']
    #allocation4 [shape = 's32[1]{0}', space=sflag, size = 0x4, scoped, tag = 'scoped memory for tpu_custom_call.1']
    #allocation5 [shape = 's32[1]{0}', space=sflag, size = 0x4, scoped, tag = 'scoped memory for tpu_custom_call.1']
    #allocation6 [shape = 'u8[4096]{0}', space=vmem, size = 0x1000, scoped, tag = 'input window, operand 1, single buffered']
    #allocation7 [shape = 'u8[4096]{0}', space=vmem, size = 0x1000, scoped, tag = 'output window, operand 0, single buffered']
    %7 = vsyncpa [#allocation5], 0
    %8 = vsyncpa [#allocation3], 0
    %9 = vsyncpa [#allocation4], 0
    // Predicated region
    $region2: #{tpu_custom_call.1} parent=1 // pred_check
      _
    $region3: #{tpu_custom_call.1} parent=1 // pred_check_branch
      %11 = sbr.rel (0) target = $region5
    $region4: #{tpu_custom_call.1} parent=1 // pred_region
      %s13 = ssub.s32 16, 16
      %14 = vsyncadd [#allocation5], %s13
      %17 = dma.hbm_to_smem %s0, 16, [#allocation2], [#allocation5]
    $region5: #{tpu_custom_call.1} parent=1 // pred_fallthru
      _
    // Predicated region
    $region6: #{tpu_custom_call.1} parent=1 // pred_check
      _
    $region7: #{tpu_custom_call.1} parent=1 // pred_check_branch
      %19 = sbr.rel (0) target = $region9
    $region8: #{tpu_custom_call.1} parent=1 // pred_region
      %s21 = ssub.s32 128, 128
      %22 = vsyncadd [#allocation3], %s21
      %s24 = sshll.u32 [#allocation6], 4
      %s25 = int_to_ptr.vmem [resolvable:$true] %s24
      %27 = dma.hbm_to_vmem [thread:$0]  %s1, 128, %s25, [#allocation3]
    $region9: #{tpu_custom_call.1} parent=1 // pred_fallthru
      _
    // Predicated region
    $region10: #{tpu_custom_call.1} parent=1 // pred_check
      _
    $region11: #{tpu_custom_call.1} parent=1 // pred_check_branch
      %29 = sbr.rel (0) target = $region13
    $region12: #{tpu_custom_call.1} parent=1 // pred_region
      %30 = dma.done [#allocation5], 16
    $region13: #{tpu_custom_call.1} parent=1 // pred_fallthru
      _
    // Predicated region
    $region14: #{tpu_custom_call.1} parent=1 // pred_check
      _
    $region15: #{tpu_custom_call.1} parent=1 // pred_check_branch
      %32 = sbr.rel (0) target = $region17
    $region16: #{tpu_custom_call.1} parent=1 // pred_region
      %33 = dma.done [#allocation3], 128
    $region17: #{tpu_custom_call.1} parent=1 // pred_fallthru
      _
    %34 = sfence
    %v35 = vld [vmem:[#allocation6] sm:$0xff]
    %s36 = sld [smem:[#allocation2]]
    %s37 = sld [smem:[#allocation2 + $0x1]]
    %s38 = ssub.f32 %s36, %s37
    %v39 = vstv %s38
    %v40 = vmul.f32 %v35, %v39
    %v41 = vand.u32 2147483647, %v40
    %v42 = vsub.f32 0.0, %v41
    %v43 = vmul.f32 %v42, 1.442695
    %v44 = vpow.pop %v43
    %v45 = vadd.f32 %v44, 1.0
    %v46 = vrcp.pop %v45
    %v47 = vmul.f32 %v44, %v46
    %vm48 = vcmp.ge.f32.partialorder %v40, 0.0
    %v49 = vsub.f32 1.0, %v47
    %v50 = vsel %vm48, %v49, %v47
    %51 = vst [vmem:[#allocation7] sm:$0xff] %v50
    // Predicated region
    $region18: #{tpu_custom_call.1} parent=1 // pred_check
      _
    $region19: #{tpu_custom_call.1} parent=1 // pred_check_branch
      %53 = sbr.rel (0) target = $region21
    $region20: #{tpu_custom_call.1} parent=1 // pred_region
      %s55 = ssub.s32 128, 128
      %56 = vsyncadd [#allocation4], %s55
      %s58 = sshll.u32 [#allocation7], 4
      %s59 = int_to_ptr.vmem [resolvable:$true] %s58
      %61 = dma.vmem_to_hbm [thread:$0]  %s59, 128, %s2, [#allocation4]
    $region21: #{tpu_custom_call.1} parent=1 // pred_fallthru
      _
    // Predicated region
    $region22: #{tpu_custom_call.1} parent=1 // pred_check
      _
    $region23: #{tpu_custom_call.1} parent=1 // pred_check_branch
      %63 = sbr.rel (0) target = $region25
    $region24: #{tpu_custom_call.1} parent=1 // pred_region
      %64 = dma.done [#allocation4], 128
    $region25: #{tpu_custom_call.1} parent=1 // pred_fallthru
      _
    %65 = vsyncpa [#allocation3], 1
    %66 = vsyncpa [#allocation4], 1
    %67 = vsyncpa [#allocation5], 1

</llo_original>
